<compile_context>
chip_gen: v6e
topology: v6e:2x2x1
jax: 0.10.0
libtpu: 0.0.40
codegen_flags: <defaults>
</compile_context>

<pallas_src>
import functools

import jax
import jax.numpy as jnp
from jax import lax
from jax.experimental import pallas as pl
from jax.experimental.pallas import tpu as pltpu


# ----------------------------------------------------------------------------
# Pallas kernel: horizontally-flipped intrinsics for both frames.
# ----------------------------------------------------------------------------
def _flip_intrinsics_kernel(k1_ref, k2_ref, f1_ref, f2_ref, *, w1, w2):
    """k1/k2: (B, 3, 3) intrinsics.  Only element [:, 0, 2] changes:
       cx' = image_width - cx  (same convention as the torch reference)."""
    k1 = k1_ref[...]
    k2 = k2_ref[...]

    # Single select mask over the full (B, 3, 3) block: row == 0 and col == 2.
    row = lax.broadcasted_iota(jnp.int32, k1.shape, 1)
    col = lax.broadcasted_iota(jnp.int32, k1.shape, 2)
    mask = (row == 0) & (col == 2)

    f1_ref[...] = jnp.where(mask, jnp.asarray(w1, k1.dtype) - k1, k1)
    f2_ref[...] = jnp.where(mask, jnp.asarray(w2, k2.dtype) - k2, k2)


@functools.partial(jax.jit, static_argnums=(3, 4, 5))
def _noaug_outputs(k_l1, k_l2, input_size, width_l1, width_l2, resize):
    """Flipped intrinsics via one minimal pallas_call + trace-time aug_size."""
    kernel = functools.partial(
        _flip_intrinsics_kernel, w1=float(width_l1), w2=float(width_l2))

    vmem = pltpu.MemorySpace.VMEM
    k_l1_flip, k_l2_flip = pl.pallas_call(
        kernel,
        # No grid, no index_maps: single invocation on full-array VMEM blocks.
        in_specs=[pl.BlockSpec(memory_space=vmem),
                  pl.BlockSpec(memory_space=vmem)],
        out_specs=(pl.BlockSpec(memory_space=vmem),
                   pl.BlockSpec(memory_space=vmem)),
        out_shape=(jax.ShapeDtypeStruct(k_l1.shape, k_l1.dtype),
                   jax.ShapeDtypeStruct(k_l2.shape, k_l2.dtype)),
    )(k_l1, k_l2)

    # aug_size is data-independent: zeros_like(input_size) with columns 0/1
    # set to the static resize constants.  XLA constant-folds this.
    aug_size = (jnp.zeros_like(input_size)
                .at[:, 0].set(resize[0])
                .at[:, 1].set(resize[1]))

    return k_l1_flip, k_l2_flip, aug_size


# ----------------------------------------------------------------------------
# Module wrapper (matches NoAugmentation.forward exactly).
# ----------------------------------------------------------------------------
class NoAugmentation:
    """JAX/Pallas port of the pass-through NoAugmentation module."""

    def __init__(self, args=None, photometric=True, trans=0.07,
                 scale=(0.93, 1.0), resize=(256, 832)):
        self._args = args
        self._photometric = photometric          # unused in this forward
        self._max_trans = trans                  # parent-class params, unused
        self._min_scale, self._max_scale = scale
        self._resize = (int(resize[0]), int(resize[1]))
        # TODO(synk): parent Augmentation_ScaleCrop's scale/crop sampling and
        # PhotometricAugmentation are unreachable from NoAugmentation.forward,
        # so they are intentionally not ported.

    def __call__(self, example_dict):
        im_l1 = example_dict["input_l1"]
        im_l2 = example_dict["input_l2"]
        k_l1 = example_dict["input_k_l1"]
        k_l2 = example_dict["input_k_l2"]
        input_size = example_dict["input_size"]

        w_l1 = int(im_l1.shape[3])
        w_l2 = int(im_l2.shape[3])

        k_l1_flip, k_l2_flip, aug_size = _noaug_outputs(
            k_l1, k_l2, input_size, w_l1, w_l2, self._resize)

        # Images and intrinsic "clones" pass through untouched: JAX arrays are
        # immutable, so aliasing is semantically identical to torch .clone()
        # and costs zero HBM traffic / zero kernel launches.
        example_dict["input_l1_aug"] = im_l1
        example_dict["input_l2_aug"] = im_l2
        example_dict["input_k_l1_aug"] = k_l1
        example_dict["input_k_l2_aug"] = k_l2
        example_dict["input_k_l1_flip_aug"] = k_l1_flip
        example_dict["input_k_l2_flip_aug"] = k_l2_flip
        example_dict["aug_size"] = aug_size
        return example_dict


if __name__ == "__main__":
    key = jax.random.PRNGKey(0)
    k1, k2, k3, k4 = jax.random.split(key, 4)

    B, C, H, W = 2, 3, 16, 16

    im_l1 = jax.random.uniform(k1, (B, C, H, W), dtype=jnp.float32)
    im_l2 = jax.random.uniform(k2, (B, C, H, W), dtype=jnp.float32)

    def make_k(kk):
        k = jnp.eye(3, dtype=jnp.float32)[None].repeat(B, axis=0) * 100.0
        k = k.at[:, 2, 2].set(1.0)
        k = k.at[:, 0, 2].set(W / 2.0)
        k = k.at[:, 1, 2].set(H / 2.0)
        return k + jax.random.uniform(kk, (B, 3, 3), dtype=jnp.float32) * 0.1

    k_l1 = make_k(k3)
    k_l2 = make_k(k4)
    input_size = jnp.tile(jnp.array([[H, W]], dtype=jnp.float32), (B, 1))

    example_dict = {
        "input_l1": im_l1,
        "input_l2": im_l2,
        "input_k_l1": k_l1,
        "input_k_l2": k_l2,
        "input_size": input_size,
    }

    aug = NoAugmentation(args=None)
    out = aug(example_dict)
    jax.block_until_ready(out["input_k_l1_flip_aug"])
    jax.block_until_ready(out["input_k_l2_flip_aug"])
    jax.block_until_ready(out["aug_size"])

    # Pure-JAX reference of the same semantics.
    ref_flip_l1 = k_l1.at[:, 0, 2].set(W - k_l1[:, 0, 2])
    ref_flip_l2 = k_l2.at[:, 0, 2].set(W - k_l2[:, 0, 2])
    ref_aug_size = jnp.zeros_like(input_size).at[:, 0].set(256.0).at[:, 1].set(832.0)

    assert out["input_l1_aug"].shape == (B, C, H, W)
    assert bool(jnp.array_equal(out["input_l1_aug"], im_l1))
    assert bool(jnp.array_equal(out["input_l2_aug"], im_l2))
    assert bool(jnp.array_equal(out["input_k_l1_aug"], k_l1))
    assert bool(jnp.array_equal(out["input_k_l2_aug"], k_l2))
    assert bool(jnp.allclose(out["input_k_l1_flip_aug"], ref_flip_l1, atol=1e-6))
    assert bool(jnp.allclose(out["input_k_l2_flip_aug"], ref_flip_l2, atol=1e-6))
    assert out["aug_size"].shape == input_size.shape
    assert bool(jnp.allclose(out["aug_size"], ref_aug_size, atol=1e-6))

    print("KERNEL_OK")
</pallas_src>

<mosaic_0001>
module attributes {stable_mosaic.version = 11 : i64} {
  func.func @_flip_intrinsics_kernel(%arg0: memref<2x3x3xf32, #tpu.memory_space<vmem>>, %arg1: memref<2x3x3xf32, #tpu.memory_space<vmem>>, %arg2: memref<2x3x3xf32, #tpu.memory_space<vmem>>, %arg3: memref<2x3x3xf32, #tpu.memory_space<vmem>>) attributes {dimension_semantics = [], scalar_prefetch = 0 : i64, scratch_operands = 0 : i64, tpu.core_type = #tpu.core_type<tc>} {
    %c0 = arith.constant 0 : index
    %c0_0 = arith.constant 0 : index
    %c0_1 = arith.constant 0 : index
    %0 = vector.load %arg0[%c0, %c0_0, %c0_1] : memref<2x3x3xf32, #tpu.memory_space<vmem>>, vector<2x3x3xf32>
    %c0_2 = arith.constant 0 : index
    %c0_3 = arith.constant 0 : index
    %c0_4 = arith.constant 0 : index
    %1 = vector.load %arg1[%c0_2, %c0_3, %c0_4] : memref<2x3x3xf32, #tpu.memory_space<vmem>>, vector<2x3x3xf32>
    %2 = tpu.iota {dimensions = array<i32: 1>} : vector<2x3x3xi32>
    %3 = tpu.iota {dimensions = array<i32: 2>} : vector<2x3x3xi32>
    %c0_i32 = arith.constant 0 : i32
    %4 = vector.broadcast %c0_i32 : i32 to vector<2x3x3xi32>
    %5 = arith.cmpi eq, %2, %4 : vector<2x3x3xi32>
    %c2_i32 = arith.constant 2 : i32
    %6 = vector.broadcast %c2_i32 : i32 to vector<2x3x3xi32>
    %7 = arith.cmpi eq, %3, %6 : vector<2x3x3xi32>
    %8 = arith.andi %5, %7 : vector<2x3x3xi1>
    %cst = arith.constant 1.600000e+01 : f32
    %9 = vector.broadcast %cst : f32 to vector<2x3x3xf32>
    %10 = arith.subf %9, %0 : vector<2x3x3xf32>
    %11 = arith.select %8, %10, %0 : vector<2x3x3xi1>, vector<2x3x3xf32>
    %c0_5 = arith.constant 0 : index
    %c0_6 = arith.constant 0 : index
    %c0_7 = arith.constant 0 : index
    %12 = vector.load %arg2[%c0_5, %c0_6, %c0_7] : memref<2x3x3xf32, #tpu.memory_space<vmem>>, vector<2x3x3xf32>
    tpu.vector_store %arg2[%c0_5, %c0_6, %c0_7], %11 {strides = array<i32>} : memref<2x3x3xf32, #tpu.memory_space<vmem>>, vector<2x3x3xf32>,
    %cst_8 = arith.constant 1.600000e+01 : f32
    %13 = vector.broadcast %cst_8 : f32 to vector<2x3x3xf32>
    %14 = arith.subf %13, %1 : vector<2x3x3xf32>
    %15 = arith.select %8, %14, %1 : vector<2x3x3xi1>, vector<2x3x3xf32>
    %c0_9 = arith.constant 0 : index
    %c0_10 = arith.constant 0 : index
    %c0_11 = arith.constant 0 : index
    %16 = vector.load %arg3[%c0_9, %c0_10, %c0_11] : memref<2x3x3xf32, #tpu.memory_space<vmem>>, vector<2x3x3xf32>
    tpu.vector_store %arg3[%c0_9, %c0_10, %c0_11], %15 {strides = array<i32>} : memref<2x3x3xf32, #tpu.memory_space<vmem>>, vector<2x3x3xf32>,
    return
  }
}

</mosaic_0001>

<llo_original>
// kernel: _noaug_outputs.1
$region0: #{_noaug_outputs.1}
  #allocation0 [shape = 'u32[]', space=smem, size = 0x4, offset = 0x4, fixed_abs, tag = 'smem constant byte address 0x4 - core index']
  #allocation1 [shape = 'u32[144,128]{1,0:T(1,128)}', space=vmem, size = 0x12000, scoped, tag = 'internal scratch']
  %s0 = inlined_call_operand.vmem [shape: f32[2,3,3], index: 0, kind: input, shape index: {}]
  %s1 = inlined_call_operand.vmem [shape: f32[2,3,3], index: 1, kind: input, shape index: {}]
  %s2 = inlined_call_operand.vmem [shape: f32[2,3,3], index: 2, kind: output, shape index: {0}]
  %s3 = inlined_call_operand.vmem [shape: f32[2,3,3], index: 3, kind: output, shape index: {1}]
  %4 = xla_tuple %s2, %s3
  %s5 = sld [smem:[#allocation0]]
  $region26: #{_noaug_outputs.1} parent=0
    _
  %s7 = ssub.s32 1, %s5
  %s8 = scalar_select 0, %s7, %s5
  // Predicated region
  $region2: #{_noaug_outputs.1} parent=0 // pred_check
    _
  $region3: #{_noaug_outputs.1} parent=0 // pred_check_branch
    %10 = sbr.rel (0) target = $region5
  $region4: #{_noaug_outputs.1} parent=0 // pred_region
    _
  $region5: #{_noaug_outputs.1} parent=0 // pred_fallthru
    _
  // Predicated region
  $region6: #{_noaug_outputs.1} parent=0 // pred_check
    _
  $region7: #{_noaug_outputs.1} parent=0 // pred_check_branch
    %12 = sbr.rel (0) target = $region9
  $region8: #{_noaug_outputs.1} parent=0 // pred_region
    _
  $region9: #{_noaug_outputs.1} parent=0 // pred_fallthru
    _
  %v13 = vld [vmem:[%s0] sm:$0x7]
  %v14 = vld [vmem:[%s0 + $0x4] sm:$0x7]
  %v15 = vld [vmem:[%s1] sm:$0x7]
  %v16 = vld [vmem:[%s1 + $0x4] sm:$0x7]
  %v17 = vlaneseq
  %v18 = vshrl.u32 %v17, 7
  %v19 = vlaneseq
  %v20 = vand.u32 %v19, 127
  %vm21 = vcmp.eq.s32.totalorder %v18, 0
  %vm22 = vcmp.eq.s32.totalorder %v20, 2
  %vm23 = vmand %vm21, %vm22
  %v24 = vsub.f32 16.0, %v13
  %v25 = vsub.f32 16.0, %v14
  %v26 = vsel %vm23, %v24, %v13
  %v27 = vsel %vm23, %v25, %v14
  %vm28 = vcmask 18432
  %29 = vst.msk [vmem:[%s2] sm:$0x7] %vm28, %v26
  %30 = vst.msk [vmem:[%s2 + $0x4] sm:$0x7] %vm28, %v27
  %v31 = vsub.f32 16.0, %v15
  %v32 = vsub.f32 16.0, %v16
  %v33 = vsel %vm23, %v31, %v15
  %v34 = vsel %vm23, %v32, %v16
  %35 = vst.msk [vmem:[%s3] sm:$0x7] %vm28, %v33
  %36 = vst.msk [vmem:[%s3 + $0x4] sm:$0x7] %vm28, %v34
  // Predicated region
  $region10: #{_noaug_outputs.1} parent=0 // pred_check
    _
  $region11: #{_noaug_outputs.1} parent=0 // pred_check_branch
    %38 = sbr.rel (0) target = $region13
  $region12: #{_noaug_outputs.1} parent=0 // pred_region
    _
  $region13: #{_noaug_outputs.1} parent=0 // pred_fallthru
    _
  // Predicated region
  $region14: #{_noaug_outputs.1} parent=0 // pred_check
    _
  $region15: #{_noaug_outputs.1} parent=0 // pred_check_branch
    %40 = sbr.rel (0) target = $region17
  $region16: #{_noaug_outputs.1} parent=0 // pred_region
    _
  $region17: #{_noaug_outputs.1} parent=0 // pred_fallthru
    _
  // Predicated region
  $region18: #{_noaug_outputs.1} parent=0 // pred_check
    _
  $region19: #{_noaug_outputs.1} parent=0 // pred_check_branch
    %42 = sbr.rel (0) target = $region21
  $region20: #{_noaug_outputs.1} parent=0 // pred_region
    _
  $region21: #{_noaug_outputs.1} parent=0 // pred_fallthru
    _
  // Predicated region
  $region22: #{_noaug_outputs.1} parent=0 // pred_check
    _
  $region23: #{_noaug_outputs.1} parent=0 // pred_check_branch
    %44 = sbr.rel (0) target = $region25
  $region24: #{_noaug_outputs.1} parent=0 // pred_region
    _
  $region25: #{_noaug_outputs.1} parent=0 // pred_fallthru
    _

</llo_original>
